<compile_context>
chip_gen: v6e
topology: v6e:2x2x1
jax: 0.10.0
libtpu: 0.0.40
codegen_flags: <defaults>
</compile_context>

<pallas_src>
import math
from functools import partial

import jax
import jax.numpy as jnp
from jax.experimental import pallas as pl
from jax.experimental.pallas import tpu as pltpu  # noqa: F401  (TPU params if shapes scale up)


def _conv1x1_interior_kernel(x_ref, w_ref, other_ref, out_ref):
    # x_ref:     (Cin+1, Lp)  zero-padded-to-128 interior lanes, + a ones row (bias fold)
    # w_ref:     (Cout, Cin+1) 1x1 kernel with the bias column appended
    # other_ref: (1, Lp)
    # out_ref:   (Cout, Lp)    lane-dense (Lp % 128 == 0) -> unmasked stores
    out_ref[...] = (
        jnp.dot(w_ref[...], x_ref[...], preferred_element_type=jnp.float32)
        + other_ref[...]
    )


def _forward_impl(x1, other, weight, bias):
    """x1: (N, Cin, H, W) NCHW; other: (W+2,); weight: (Cout, Cin, 1, 1); bias: (Cout,)."""
    n, cin, h, w = x1.shape
    cout = weight.shape[0]
    hp, wp = h + 2, w + 2

    # ---- interior lanes only: L = N*H*W (256 at the test shape) -------------
    L = n * h * w
    lp = ((L + 127) // 128) * 128  # lane-dense pad (no-op when L % 128 == 0)

    x_flat = jnp.transpose(x1.astype(jnp.float32), (1, 0, 2, 3)).reshape(cin, L)
    ones_row = jnp.ones((1, L), jnp.float32)
    x_aug = jnp.concatenate([x_flat, ones_row], axis=0)          # (Cin+1, L)

    w2 = weight.reshape(cout, cin).astype(jnp.float32)
    w_aug = jnp.concatenate([w2, bias.reshape(cout, 1).astype(jnp.float32)], axis=1)

    other_f = other.astype(jnp.float32)
    # interior columns of the output see other[1:W+1], repeated every W lanes
    other_flat = jnp.tile(other_f[1 : w + 1], n * h).reshape(1, L)

    if lp > L:
        x_aug = jnp.pad(x_aug, ((0, 0), (0, lp - L)))
        other_flat = jnp.pad(other_flat, ((0, 0), (0, lp - L)))

    flops = 2 * cout * (cin + 1) * lp
    bytes_accessed = 4 * ((cin + 1) * lp + cout * (cin + 1) + lp + cout * lp)

    out_flat = pl.pallas_call(
        _conv1x1_interior_kernel,
        out_shape=jax.ShapeDtypeStruct((cout, lp), jnp.float32),
        cost_estimate=pl.CostEstimate(
            flops=flops, transcendentals=0, bytes_accessed=bytes_accessed
        ),
    )(x_aug, w_aug, other_flat)

    # interior back to NCHW (free metadata for N=1)
    interior = jnp.transpose(out_flat[:, :L].reshape(cout, n, h, w), (1, 0, 2, 3))

    # border of the padded conv output is bias only; add `other` broadcast over width.
    # These ops fuse under jit (cheap fill, no extra kernel launch of note).
    fill = jnp.broadcast_to(
        bias.reshape(1, cout, 1, 1).astype(jnp.float32)
        + other_f.reshape(1, 1, 1, wp),
        (n, cout, hp, wp),
    )
    return fill.at[:, :, 1 : h + 1, 1 : w + 1].set(interior)


model_forward = jax.jit(_forward_impl)


def _reference(x1, other, weight, bias):
    # plain-JAX reference: 1x1 conv with padding=1 (== matmul over zero-padded x), then add
    n, cin, h, w = x1.shape
    cout = weight.shape[0]
    x_pad = jnp.pad(x1, ((0, 0), (0, 0), (1, 1), (1, 1)))
    w2 = weight.reshape(cout, cin)
    y = jnp.einsum("oc,nchw->nohw", w2, x_pad) + bias.reshape(1, cout, 1, 1)
    return y + other.reshape(1, 1, 1, -1)


if __name__ == "__main__":
    key = jax.random.PRNGKey(0)
    k_x, k_o, k_w, k_b = jax.random.split(key, 4)

    N, CIN, COUT, H, W = 1, 5, 7, 16, 16  # small spatial; channels match the module
    HP, WP = H + 2, W + 2

    x1 = jax.random.normal(k_x, (N, CIN, H, W), dtype=jnp.float32)
    other = jax.random.normal(k_o, (WP,), dtype=jnp.float32)

    # Deterministic Conv2d(5, 7, 1) parameter init (kaiming-uniform-style bounds).
    bound = 1.0 / math.sqrt(CIN * 1 * 1)
    weight = jax.random.uniform(k_w, (COUT, CIN, 1, 1), jnp.float32, -bound, bound)
    bias = jax.random.uniform(k_b, (COUT,), jnp.float32, -bound, bound)

    out = model_forward(x1, other, weight, bias)
    out = jax.block_until_ready(out)

    ref = _reference(x1, other, weight, bias)
    assert out.shape == (N, COUT, HP, WP), out.shape
    assert jnp.allclose(out, ref, atol=1e-5, rtol=1e-5), float(
        jnp.max(jnp.abs(out - ref))
    )
    print("KERNEL_OK")
</pallas_src>

<mosaic_0001>
module attributes {stable_mosaic.version = 11 : i64} {
  func.func @_conv1x1_interior_kernel(%arg0: memref<6x256xf32, #tpu.memory_space<vmem>>, %arg1: memref<7x6xf32, #tpu.memory_space<vmem>>, %arg2: memref<1x256xf32, #tpu.memory_space<vmem>>, %arg3: memref<7x256xf32, #tpu.memory_space<vmem>>) attributes {dimension_semantics = [], scalar_prefetch = 0 : i64, scratch_operands = 0 : i64, tpu.core_type = #tpu.core_type<tc>} {
    %c0 = arith.constant 0 : index
    %c0_0 = arith.constant 0 : index
    %0 = vector.load %arg1[%c0, %c0_0] : memref<7x6xf32, #tpu.memory_space<vmem>>, vector<7x6xf32>
    %c0_1 = arith.constant 0 : index
    %c0_2 = arith.constant 0 : index
    %1 = vector.load %arg0[%c0_1, %c0_2] : memref<6x256xf32, #tpu.memory_space<vmem>>, vector<6x256xf32>
    %cst = arith.constant dense<0.000000e+00> : vector<7x256xf32>
    %2 = tpu.matmul %0, %1, %cst {dimension_numbers = #tpu.dot_dimension_numbers<[1], [0], [0], [1], [0, 0, 1, 1], [], []>} : vector<7x6xf32>, vector<6x256xf32>, vector<7x256xf32> -> vector<7x256xf32>
    %c0_3 = arith.constant 0 : index
    %c0_4 = arith.constant 0 : index
    %3 = vector.load %arg2[%c0_3, %c0_4] : memref<1x256xf32, #tpu.memory_space<vmem>>, vector<1x256xf32>
    %4 = vector.broadcast %3 : vector<1x256xf32> to vector<7x256xf32>
    %5 = arith.addf %2, %4 : vector<7x256xf32>
    %c0_5 = arith.constant 0 : index
    %c0_6 = arith.constant 0 : index
    %6 = vector.load %arg3[%c0_5, %c0_6] : memref<7x256xf32, #tpu.memory_space<vmem>>, vector<7x256xf32>
    tpu.vector_store %arg3[%c0_5, %c0_6], %5 {strides = array<i32>} : memref<7x256xf32, #tpu.memory_space<vmem>>, vector<7x256xf32>,
    return
  }
}

</mosaic_0001>

<llo_original>
// kernel: tile.8
$region0: #{tile.8}
  #allocation0 [shape = 's32[1]{0}', space=sflag, size = 0x4, scoped, tag = 'scoped memory for tile.8']
  %s0 = inlined_call_operand.vmem [shape: f32[16], index: 0, kind: input, shape index: {}]
  %s1 = inlined_call_operand.vmem [shape: f32[16,16], index: 1, kind: output, shape index: {}]
  // Predicated region
  $region2: #{tile.8} parent=0 // pred_check
    _
  $region3: #{tile.8} parent=0 // pred_check_branch
    %3 = sbr.rel (0) target = $region5
  $region4: #{tile.8} parent=0 // pred_region
    _
  $region5: #{tile.8} parent=0 // pred_fallthru
    _
  %v4 = vld [vmem:[%s0] ss:$0 sm:$0xff]
  %5 = vst [vmem:[%s1] sm:$0xff] %v4
  %s6 = scalar_lea.vmem %s1, 8
  %7 = vst [vmem:[%s6] sm:$0xff] %v4

// kernel: tile.9
$region0: #{tile.9}
  %s0 = inlined_call_operand.vmem [shape: f32[16,16], index: 0, kind: input, shape index: {}]
  %s1 = inlined_call_operand.vmem [shape: f32[1,256], index: 1, kind: output, shape index: {}]
  $region1: #{tile.9} parent=0
    #allocation0 [shape = 'u8[8192]{0}', space=vmem, size = 0x2000, scoped, tag = 'scoped mem for output reshape']
    %s2 = smov 3
    %v3 = vld [vmem:[%s0] ss:$8 sm:%s2]
    %vm4 = vcmask 130048
    %5 = vst.msk [vmem:[#allocation0] ss:$8 sm:$0x3] %vm4, %v3
    %s6 = scalar_lea.vmem %s0, 7
    %s7 = smov 3
    %v8 = vld [vmem:[%s6] ss:$8 sm:%s7]
    %9 = vrot.lane.b32.xlu0 %v8, 112
    %v10 = vpop.permute.xlu0 %9
    %vm11 = vcmask 1048448
    %12 = vst.msk [vmem:[#allocation0] ss:$8 sm:$0x3] %vm11, %v10
    %s13 = scalar_lea.vmem %s0, 6
    %s14 = smov 3
    %v15 = vld [vmem:[%s13] ss:$8 sm:%s14]
    %16 = vrot.lane.b32.xlu0 %v15, 96
    %v17 = vpop.permute.xlu0 %16
    %vm18 = vcmask 917248
    %19 = vst.msk [vmem:[#allocation0] ss:$8 sm:$0x3] %vm18, %v17
    %s20 = scalar_lea.vmem %s0, 5
    %s21 = smov 3
    %v22 = vld [vmem:[%s20] ss:$8 sm:%s21]
    %23 = vrot.lane.b32.xlu0 %v22, 80
    %v24 = vpop.permute.xlu0 %23
    %vm25 = vcmask 786048
    %26 = vst.msk [vmem:[#allocation0] ss:$8 sm:$0x3] %vm25, %v24
    %s27 = scalar_lea.vmem %s0, 4
    %s28 = smov 3
    %v29 = vld [vmem:[%s27] ss:$8 sm:%s28]
    %30 = vrot.lane.b32.xlu0 %v29, 64
    %v31 = vpop.permute.xlu0 %30
    %vm32 = vcmask 654848
    %33 = vst.msk [vmem:[#allocation0] ss:$8 sm:$0x3] %vm32, %v31
    %s34 = scalar_lea.vmem %s0, 3
    %s35 = smov 3
    %v36 = vld [vmem:[%s34] ss:$8 sm:%s35]
    %37 = vrot.lane.b32.xlu0 %v36, 48
    %v38 = vpop.permute.xlu0 %37
    %vm39 = vcmask 523648
    %40 = vst.msk [vmem:[#allocation0] ss:$8 sm:$0x3] %vm39, %v38
    %s41 = scalar_lea.vmem %s0, 2
    %s42 = smov 3
    %v43 = vld [vmem:[%s41] ss:$8 sm:%s42]
    %44 = vrot.lane.b32.xlu0 %v43, 32
    %v45 = vpop.permute.xlu0 %44
    %vm46 = vcmask 392448
    %47 = vst.msk [vmem:[#allocation0] ss:$8 sm:$0x3] %vm46, %v45
    %s48 = scalar_lea.vmem %s0, 1
    %s49 = smov 3
    %v50 = vld [vmem:[%s48] ss:$8 sm:%s49]
    %51 = vrot.lane.b32.xlu0 %v50, 16
    %v52 = vpop.permute.xlu0 %51
    %vm53 = vcmask 261248
    %54 = vst.msk [vmem:[#allocation0] ss:$8 sm:$0x3] %vm53, %v52
    %s56 = sshll.u32 1, 1
    %s57 = ssub.s32 %s56, 1
    %v59 = vld [vmem:[#allocation0] sm:%s57]
    %s60 = sshll.u32 1, 1
    %s61 = ssub.s32 %s60, 1
    %62 = vst [vmem:[%s1] sm:%s61] %v59
    %s63 = scalar_lea.vmem [#allocation0], 8
    %v64 = vld [vmem:[%s63] sm:%s57]
    %s65 = sshll.u32 1, 1
    %s66 = ssub.s32 %s65, 1
    %s67 = scalar_lea.vmem %s1, 1
    %68 = vst [vmem:[%s67] sm:%s66] %v64

// kernel: _forward_impl.1
$region0: #{_forward_impl.1}
  #allocation0 [shape = 'u32[]', space=smem, size = 0x4, offset = 0x4, fixed_abs, tag = 'smem constant byte address 0x4 - core index']
  #allocation1 [shape = 'u32[144,128]{1,0:T(1,128)}', space=vmem, size = 0x12000, scoped, tag = 'internal scratch']
  %s0 = inlined_call_operand.vmem [shape: f32[6,256], index: 0, kind: input, shape index: {}]
  %s1 = inlined_call_operand.vmem [shape: f32[7,6], index: 1, kind: input, shape index: {}]
  %s2 = inlined_call_operand.vmem [shape: f32[1,256], index: 2, kind: input, shape index: {}]
  %s3 = inlined_call_operand.vmem [shape: f32[7,256], index: 3, kind: output, shape index: {}]
  %s4 = sld [smem:[#allocation0]]
  $region22: #{_forward_impl.1} parent=0
    _
  %s6 = ssub.s32 1, %s4
  %s7 = scalar_select 0, %s6, %s4
  // Predicated region
  $region2: #{_forward_impl.1} parent=0 // pred_check
    _
  $region3: #{_forward_impl.1} parent=0 // pred_check_branch
    %9 = sbr.rel (0) target = $region5
  $region4: #{_forward_impl.1} parent=0 // pred_region
    _
  $region5: #{_forward_impl.1} parent=0 // pred_fallthru
    _
  // Predicated region
  $region6: #{_forward_impl.1} parent=0 // pred_check
    _
  $region7: #{_forward_impl.1} parent=0 // pred_check_branch
    %11 = sbr.rel (0) target = $region9
  $region8: #{_forward_impl.1} parent=0 // pred_region
    _
  $region9: #{_forward_impl.1} parent=0 // pred_fallthru
    _
  // Predicated region
  $region10: #{_forward_impl.1} parent=0 // pred_check
    _
  $region11: #{_forward_impl.1} parent=0 // pred_check_branch
    %13 = sbr.rel (0) target = $region13
  $region12: #{_forward_impl.1} parent=0 // pred_region
    _
  $region13: #{_forward_impl.1} parent=0 // pred_fallthru
    _
  %v14 = vld [vmem:[%s1] sm:$0x7f]
  %v15 = vld [vmem:[%s0] sm:$0x3f]
  %v16 = vld [vmem:[%s0 + $0x8] sm:$0x3f]
  %v17 = vld [vmem:[%s2] sm:$0x3]
  %v19 = vlaneseq
  %v20 = vshrl.u32 %v19, 7
  %v21 = vsub.s32 0, %v20
  %v22 = vrot.slane %v17, %v21
  %v23 = vlaneseq
  %v24 = vshrl.u32 %v23, 7
  %v25 = vsub.s32 1, %v24
  %v26 = vrot.slane %v17, %v25
  %vm29 = vcmask 48128
  %v31 = vsel %vm29, %v14, 0
  %vm33 = vcmask 1045504
  %v35 = vsel %vm33, %v15, 0
  %v38 = vsel %vm33, %v16, 0
  %40 = vmatprep.subr.mxu0 0.0
  %41 = vmatpush1.msra.mxu0 0.0
  %42 = vmatprep.subr.mxu0 0.0
  %43 = vmatpush1.msra.mxu0 0.0
  %44 = vmatprep.subr.mxu0 0.0
  %45 = vmatpush1.msra.mxu0 0.0
  %46 = vmatprep.subr.mxu0 0.0
  %47 = vmatpush1.msra.mxu0 0.0
  %48 = vmatprep.subr.mxu0 0.0
  %49 = vmatpush1.msra.mxu0 0.0
  %50 = vmatprep.subr.mxu0 0.0
  %51 = vmatpush1.msra.mxu0 0.0
  %52 = vmatprep.subr.mxu0 0.0
  %53 = vmatpush1.msra.mxu0 0.0
  %54 = vmatprep.subr.mxu0 0.0
  %55 = vmatpush1.msra.mxu0 0.0
  %56 = vmatprep.subr.mxu0 0.0
  %57 = vmatpush1.msra.mxu0 0.0
  %58 = vmatprep.subr.mxu0 0.0
  %59 = vmatpush1.msra.mxu0 0.0
  %60 = vmatprep.subr.mxu0 0.0
  %61 = vmatpush1.msra.mxu0 0.0
  %62 = vmatprep.subr.mxu0 0.0
  %63 = vmatpush1.msra.mxu0 0.0
  %64 = vmatprep.subr.mxu0 0.0
  %65 = vmatpush1.msra.mxu0 0.0
  %66 = vmatprep.subr.mxu0 0.0
  %67 = vmatpush1.msra.mxu0 0.0
  %68 = vmatprep.subr.mxu0 0.0
  %69 = vmatpush1.msra.mxu0 0.0
  %70 = vmatprep.subr.mxu0 %v38
  %71 = vmatpush1.msra.mxu0 %v35
  %72 = vmatprep.subr.mxu0 0.0
  %73 = vmatpush2.msra.mxu0 0.0
  %74 = vmatprep.subr.mxu0 0.0
  %75 = vmatpush2.msra.mxu0 0.0
  %76 = vmatprep.subr.mxu0 0.0
  %77 = vmatpush2.msra.mxu0 0.0
  %78 = vmatprep.subr.mxu0 0.0
  %79 = vmatpush2.msra.mxu0 0.0
  %80 = vmatprep.subr.mxu0 0.0
  %81 = vmatpush2.msra.mxu0 0.0
  %82 = vmatprep.subr.mxu0 0.0
  %83 = vmatpush2.msra.mxu0 0.0
  %84 = vmatprep.subr.mxu0 0.0
  %85 = vmatpush2.msra.mxu0 0.0
  %86 = vmatprep.subr.mxu0 0.0
  %87 = vmatpush2.msra.mxu0 0.0
  %88 = vmatprep.subr.mxu0 0.0
  %89 = vmatpush2.msra.mxu0 0.0
  %90 = vmatprep.subr.mxu0 0.0
  %91 = vmatpush2.msra.mxu0 0.0
  %92 = vmatprep.subr.mxu0 0.0
  %93 = vmatpush2.msra.mxu0 0.0
  %94 = vmatprep.subr.mxu0 0.0
  %95 = vmatpush2.msra.mxu0 0.0
  %96 = vmatprep.subr.mxu0 0.0
  %97 = vmatpush2.msra.mxu0 0.0
  %98 = vmatprep.subr.mxu0 0.0
  %99 = vmatpush2.msra.mxu0 0.0
  %100 = vmatprep.subr.mxu0 0.0
  %101 = vmatpush2.msra.mxu0 0.0
  %102 = vmatprep.subr.mxu0 0.0
  %103 = vmatpush2.msra.mxu0 0.0
  %104 = vmatprep.mubr.f32.mxu0 0.0
  %105 = vmatmul.mubr.f32.gmra.mxu0 %v31
  %v106 = vpop.f32.mrf.mxu0
  %v107 = vadd.f32 %v22, %v106
  %v108 = vpop.f32.mrf.mxu0
  %v109 = vadd.f32 %v26, %v108
  %110 = vdwg.mxu0
  %111 = vst [vmem:[%s3] sm:$0x7f] %v107
  %112 = vst [vmem:[%s3 + $0x8] sm:$0x7f] %v109
  // Predicated region
  $region14: #{_forward_impl.1} parent=0 // pred_check
    _
  $region15: #{_forward_impl.1} parent=0 // pred_check_branch
    %114 = sbr.rel (0) target = $region17
  $region16: #{_forward_impl.1} parent=0 // pred_region
    _
  $region17: #{_forward_impl.1} parent=0 // pred_fallthru
    _
  // Predicated region
  $region18: #{_forward_impl.1} parent=0 // pred_check
    _
  $region19: #{_forward_impl.1} parent=0 // pred_check_branch
    %116 = sbr.rel (0) target = $region21
  $region20: #{_forward_impl.1} parent=0 // pred_region
    _
  $region21: #{_forward_impl.1} parent=0 // pred_fallthru
    _

</llo_original>
